<compile_context>
chip_gen: v5e
topology: v5e:2x2
jax: 0.10.0
libtpu: 0.0.40
codegen_flags: <defaults>
</compile_context>

<pallas_src>
import functools

import numpy as np
import jax
import jax.numpy as jnp
from jax.experimental import pallas as pl
from jax.experimental.pallas import tpu as pltpu


# ------------------------------------ Pallas kernel --------------------------------------------
def dilated_block_kernel(x_ref,       # (B_blk, C, T)        input block
                         wf_ref,      # (C, 3C)              fused taps [wp@wd0 | wp@wd1 | wp@wd2]
                         bf_ref,      # (C, 1)               fused bias wp@bd + bp
                         o_ref,       # (B_blk, C, T)        output block
                         pad_ref,     # VMEM scratch (B_blk, C, T + 2*dilation)
                         *, dilation):
    B_blk, C, T = x_ref.shape

    # Zero the two halo slices unconditionally every step (cheap, and safe when the
    # batch-block grid axis is sharded across TensorCores on v7x).
    halo = jnp.zeros((B_blk, C, dilation), jnp.float32)
    pad_ref[:, :, pl.ds(0, dilation)] = halo
    pad_ref[:, :, pl.ds(T + dilation, dilation)] = halo

    # Place x at lane offset `dilation`; reads at offsets 0 / 2*dilation then give
    # x[t - dilation] / x[t + dilation] with zero padding at the sequence edges.
    pad_ref[:, :, pl.ds(dilation, T)] = x_ref[...]

    # Build one (3C, B_blk*T) im2col slab (per-batch halos, so shifts never bleed
    # across batch elements) and one (C, B_blk*T) residual slab.
    xs, parts = [], []
    for b in range(B_blk):                                  # static unroll (B_blk <= 8)
        xb = x_ref[b]                                       # (C, T)
        x_prev = pad_ref[b, :, pl.ds(0, T)]                 # x[t - dilation]
        x_next = pad_ref[b, :, pl.ds(2 * dilation, T)]      # x[t + dilation]
        xs.append(xb)
        parts.append(jnp.concatenate([x_prev, xb, x_next], axis=0))   # (3C, T)

    stacked = jnp.concatenate(parts, axis=1)                # (3C, B_blk*T)
    x_all = jnp.concatenate(xs, axis=1)                     # (C,  B_blk*T)

    # Single fused dilated-conv + 1x1-conv matmul, residual add, LeakyReLU(0.2).
    y = jnp.dot(wf_ref[...], stacked, preferred_element_type=jnp.float32) + bf_ref[...]
    y = y + x_all
    y = jnp.maximum(y, 0.2 * y)

    for b in range(B_blk):                                  # lane-dense (C, T) stores
        o_ref[b] = y[:, b * T:(b + 1) * T].astype(o_ref.dtype)


# ---------------------------------------- wrapper ----------------------------------------------
def _pick_batch_block(B, C, T, target_bytes=2 << 20, max_unroll=8):
    """Pick a batch block so each input block is ~<=2 MiB and the in-kernel unroll is bounded."""
    per = max(C * T * 4, 1)
    bb = max(1, min(B, max_unroll, target_bytes // per))
    while B % bb:
        bb -= 1
    return bb


def dilated_block_forward(x, params, dilation):
    """x: (B, C, T) float32. Returns (B, C, T) float32."""
    B, C, T = x.shape
    hi = jax.lax.Precision.HIGHEST
    wd, bd, wp, bp = params["wd"], params["bd"], params["wp"], params["bp"]

    # Fold the 1x1 conv into the dilated conv (exact in real arithmetic) and stack the
    # three taps along the lane axis -> one (C, 3C) weight + one (C, 1) bias.
    wf = jnp.concatenate([jnp.dot(wp, wd[k], precision=hi) for k in range(3)], axis=1)
    bf = jnp.dot(wp, bd, precision=hi) + bp

    B_blk = _pick_batch_block(B, C, T)
    kernel = functools.partial(dilated_block_kernel, dilation=dilation)

    grid_spec = pltpu.PrefetchScalarGridSpec(
        num_scalar_prefetch=0,
        grid=(B // B_blk,),                                 # one multi-batch block per step
        in_specs=[
            pl.BlockSpec((B_blk, C, T), lambda i: (i, 0, 0)),
            pl.BlockSpec((C, 3 * C), lambda i: (0, 0)),     # fused weight stays VMEM-resident
            pl.BlockSpec((C, 1), lambda i: (0, 0)),         # fused bias stays VMEM-resident
        ],
        out_specs=pl.BlockSpec((B_blk, C, T), lambda i: (i, 0, 0)),
        scratch_shapes=[pltpu.VMEM((B_blk, C, T + 2 * dilation), jnp.float32)],
    )

    cost = pl.CostEstimate(
        flops=2 * B * (3 * C) * C * T + 4 * B * C * T,      # fused matmul + residual/leaky
        transcendentals=0,
        bytes_accessed=2 * B * C * T * 4 + (3 * C * C + C) * 4,
    )

    return pl.pallas_call(
        kernel,
        out_shape=jax.ShapeDtypeStruct((B, C, T), jnp.float32),
        grid_spec=grid_spec,
        compiler_params=pltpu.CompilerParams(
            dimension_semantics=("parallel",),              # batch-block axis shards across TCs
            vmem_limit_bytes=64 * 1024 * 1024,
        ),
        cost_estimate=cost,
    )(x, wf, bf)


# --------------------------------- deterministic parameters ------------------------------------
def init_params(key, channels):
    """PyTorch Conv1d default init: U(-1/sqrt(fan_in), 1/sqrt(fan_in)), fan_in = C_in * k."""
    def conv_init(k, fan_in, w_shape, b_shape):
        k1, k2 = jax.random.split(k)
        bound = 1.0 / np.sqrt(fan_in)
        w = jax.random.uniform(k1, w_shape, jnp.float32, -bound, bound)
        b = jax.random.uniform(k2, b_shape, jnp.float32, -bound, bound)
        return w, b

    kd, kp = jax.random.split(key)
    wd, bd = conv_init(kd, channels * 3, (3, channels, channels), (channels, 1))
    wp, bp = conv_init(kp, channels * 1, (channels, channels), (channels, 1))
    return dict(wd=wd, bd=bd, wp=wp, bp=bp)


# ----------------------------------- pure-JAX reference ----------------------------------------
def dilated_block_ref(x, params, dilation):
    """Unfused reference matching the PyTorch two-conv ordering."""
    B, C, T = x.shape
    hi = jax.lax.Precision.HIGHEST
    xp = jnp.pad(x, ((0, 0), (0, 0), (dilation, dilation)))
    wd, bd, wp, bp = params["wd"], params["bd"], params["wp"], params["bp"]
    h = (jnp.einsum("oi,bit->bot", wd[0], xp[:, :, 0:T], precision=hi)
         + jnp.einsum("oi,bit->bot", wd[1], xp[:, :, dilation:dilation + T], precision=hi)
         + jnp.einsum("oi,bit->bot", wd[2], xp[:, :, 2 * dilation:2 * dilation + T], precision=hi)
         + bd[None])
    y = jnp.einsum("oi,bit->bot", wp, h, precision=hi) + bp[None]
    y = y + x
    return jnp.where(y >= 0.0, y, 0.2 * y)


# --------------------------------------------- main --------------------------------------------
if __name__ == "__main__":
    batch = 2
    channels = 16
    seq = 256          # time axis = lane axis; multiple of 128 -> unmasked vector stores
    dilation = 3

    key = jax.random.PRNGKey(0)
    k_params, k_x = jax.random.split(key)

    params = init_params(k_params, channels)
    x = jax.random.normal(k_x, (batch, channels, seq), jnp.float32)

    out = jax.block_until_ready(dilated_block_forward(x, params, dilation))
    ref = jax.block_until_ready(dilated_block_ref(x, params, dilation))

    # atol slightly above pure-f32 noise to absorb the (exact-in-real-arithmetic) weight folding.
    np.testing.assert_allclose(np.asarray(out), np.asarray(ref), rtol=1e-4, atol=2e-5)
    assert out.shape == (batch, channels, seq)

    print("KERNEL_OK")
</pallas_src>

<mosaic_0001>
module attributes {stable_mosaic.version = 11 : i64} {
  func.func @dilated_block_kernel(%arg0: i32, %arg1: memref<2x16x256xf32, #tpu.memory_space<vmem>>, %arg2: memref<16x48xf32, #tpu.memory_space<vmem>>, %arg3: memref<16x1xf32, #tpu.memory_space<vmem>>, %arg4: memref<2x16x256xf32, #tpu.memory_space<vmem>>, %arg5: memref<2x16x262xf32, #tpu.memory_space<vmem>>) attributes {dimension_semantics = [#tpu.dimension_semantics<parallel>], iteration_bounds = array<i64: 1>, scalar_prefetch = 0 : i64, scratch_operands = 1 : i64, tpu.core_type = #tpu.core_type<tc>, window_params = [{transform_indices = @transform_0, window_bounds = array<i64: 2, 16, 256>}, {pipeline_mode = #tpu.pipeline_mode<synchronous>, transform_indices = @transform_1, window_bounds = array<i64: 16, 48>}, {pipeline_mode = #tpu.pipeline_mode<synchronous>, transform_indices = @transform_2, window_bounds = array<i64: 16, 1>}, {transform_indices = @transform_3, window_bounds = array<i64: 2, 16, 256>}]} {
    %cst = arith.constant 0.000000e+00 : f32
    %0 = vector.broadcast %cst : f32 to vector<2x16x3xf32>
    %c0 = arith.constant 0 : index
    %c0_0 = arith.constant 0 : index
    %c0_1 = arith.constant 0 : index
    %1 = vector.load %arg5[%c0, %c0_0, %c0_1] : memref<2x16x262xf32, #tpu.memory_space<vmem>>, vector<2x16x3xf32>
    tpu.vector_store %arg5[%c0, %c0_0, %c0_1], %0 {strides = array<i32>} : memref<2x16x262xf32, #tpu.memory_space<vmem>>, vector<2x16x3xf32>,
    %c0_2 = arith.constant 0 : index
    %c0_3 = arith.constant 0 : index
    %c259 = arith.constant 259 : index
    %2 = vector.load %arg5[%c0_2, %c0_3, %c259] : memref<2x16x262xf32, #tpu.memory_space<vmem>>, vector<2x16x3xf32>
    tpu.vector_store %arg5[%c0_2, %c0_3, %c259], %0 {strides = array<i32>} : memref<2x16x262xf32, #tpu.memory_space<vmem>>, vector<2x16x3xf32>,
    %c0_4 = arith.constant 0 : index
    %c0_5 = arith.constant 0 : index
    %c0_6 = arith.constant 0 : index
    %3 = vector.load %arg1[%c0_4, %c0_5, %c0_6] : memref<2x16x256xf32, #tpu.memory_space<vmem>>, vector<2x16x256xf32>
    %c0_7 = arith.constant 0 : index
    %c0_8 = arith.constant 0 : index
    %c3 = arith.constant 3 : index
    %4 = vector.load %arg5[%c0_7, %c0_8, %c3] : memref<2x16x262xf32, #tpu.memory_space<vmem>>, vector<2x16x256xf32>
    tpu.vector_store %arg5[%c0_7, %c0_8, %c3], %3 {strides = array<i32>} : memref<2x16x262xf32, #tpu.memory_space<vmem>>, vector<2x16x256xf32>,
    %c0_9 = arith.constant 0 : index
    %c0_10 = arith.constant 0 : index
    %c0_11 = arith.constant 0 : index
    %5 = vector.load %arg1[%c0_9, %c0_10, %c0_11] : memref<2x16x256xf32, #tpu.memory_space<vmem>>, vector<1x16x256xf32>
    %6 = vector.shape_cast %5 : vector<1x16x256xf32> to vector<16x256xf32>
    %c0_12 = arith.constant 0 : index
    %c0_13 = arith.constant 0 : index
    %c0_14 = arith.constant 0 : index
    %7 = vector.load %arg5[%c0_12, %c0_13, %c0_14] : memref<2x16x262xf32, #tpu.memory_space<vmem>>, vector<1x16x256xf32>
    %8 = vector.shape_cast %7 : vector<1x16x256xf32> to vector<16x256xf32>
    %c0_15 = arith.constant 0 : index
    %c0_16 = arith.constant 0 : index
    %c6 = arith.constant 6 : index
    %9 = vector.load %arg5[%c0_15, %c0_16, %c6] : memref<2x16x262xf32, #tpu.memory_space<vmem>>, vector<1x16x256xf32>
    %10 = vector.shape_cast %9 : vector<1x16x256xf32> to vector<16x256xf32>
    %11 = tpu.concatenate %8, %6, %10 in 0 : vector<16x256xf32>, vector<16x256xf32>, vector<16x256xf32> -> vector<48x256xf32>
    %c1 = arith.constant 1 : index
    %c0_17 = arith.constant 0 : index
    %c0_18 = arith.constant 0 : index
    %12 = vector.load %arg1[%c1, %c0_17, %c0_18] : memref<2x16x256xf32, #tpu.memory_space<vmem>>, vector<1x16x256xf32>
    %13 = vector.shape_cast %12 : vector<1x16x256xf32> to vector<16x256xf32>
    %c1_19 = arith.constant 1 : index
    %c0_20 = arith.constant 0 : index
    %c0_21 = arith.constant 0 : index
    %14 = vector.load %arg5[%c1_19, %c0_20, %c0_21] : memref<2x16x262xf32, #tpu.memory_space<vmem>>, vector<1x16x256xf32>
    %15 = vector.shape_cast %14 : vector<1x16x256xf32> to vector<16x256xf32>
    %c1_22 = arith.constant 1 : index
    %c0_23 = arith.constant 0 : index
    %c6_24 = arith.constant 6 : index
    %16 = vector.load %arg5[%c1_22, %c0_23, %c6_24] : memref<2x16x262xf32, #tpu.memory_space<vmem>>, vector<1x16x256xf32>
    %17 = vector.shape_cast %16 : vector<1x16x256xf32> to vector<16x256xf32>
    %18 = tpu.concatenate %15, %13, %17 in 0 : vector<16x256xf32>, vector<16x256xf32>, vector<16x256xf32> -> vector<48x256xf32>
    %19 = tpu.concatenate %11, %18 in 1 : vector<48x256xf32>, vector<48x256xf32> -> vector<48x512xf32>
    %20 = tpu.concatenate %6, %13 in 1 : vector<16x256xf32>, vector<16x256xf32> -> vector<16x512xf32>
    %c0_25 = arith.constant 0 : index
    %c0_26 = arith.constant 0 : index
    %21 = vector.load %arg2[%c0_25, %c0_26] : memref<16x48xf32, #tpu.memory_space<vmem>>, vector<16x48xf32>
    %cst_27 = arith.constant dense<0.000000e+00> : vector<16x512xf32>
    %22 = tpu.matmul %21, %19, %cst_27 {dimension_numbers = #tpu.dot_dimension_numbers<[1], [0], [0], [1], [0, 0, 1, 1], [], []>} : vector<16x48xf32>, vector<48x512xf32>, vector<16x512xf32> -> vector<16x512xf32>
    %c0_28 = arith.constant 0 : index
    %c0_29 = arith.constant 0 : index
    %23 = vector.load %arg3[%c0_28, %c0_29] : memref<16x1xf32, #tpu.memory_space<vmem>>, vector<16x1xf32>
    %24 = vector.broadcast %23 : vector<16x1xf32> to vector<16x512xf32>
    %25 = arith.addf %22, %24 : vector<16x512xf32>
    %26 = arith.addf %25, %20 : vector<16x512xf32>
    %cst_30 = arith.constant 2.000000e-01 : f32
    %27 = vector.broadcast %cst_30 : f32 to vector<16x512xf32>
    %28 = arith.mulf %27, %26 : vector<16x512xf32>
    %29 = arith.maximumf %26, %28 : vector<16x512xf32>
    %30 = vector.extract_strided_slice %29 {offsets = [0, 0], sizes = [16, 256], strides = [1, 1]} : vector<16x512xf32> to vector<16x256xf32>
    %c0_31 = arith.constant 0 : index
    %c0_32 = arith.constant 0 : index
    %c0_33 = arith.constant 0 : index
    %31 = vector.load %arg4[%c0_31, %c0_32, %c0_33] : memref<2x16x256xf32, #tpu.memory_space<vmem>>, vector<1x16x256xf32>
    %32 = vector.shape_cast %31 : vector<1x16x256xf32> to vector<16x256xf32>
    %33 = vector.shape_cast %30 : vector<16x256xf32> to vector<1x16x256xf32>
    tpu.vector_store %arg4[%c0_31, %c0_32, %c0_33], %33 {strides = array<i32>} : memref<2x16x256xf32, #tpu.memory_space<vmem>>, vector<1x16x256xf32>,
    %34 = vector.extract_strided_slice %29 {offsets = [0, 256], sizes = [16, 256], strides = [1, 1]} : vector<16x512xf32> to vector<16x256xf32>
    %c1_34 = arith.constant 1 : index
    %c0_35 = arith.constant 0 : index
    %c0_36 = arith.constant 0 : index
    %35 = vector.load %arg4[%c1_34, %c0_35, %c0_36] : memref<2x16x256xf32, #tpu.memory_space<vmem>>, vector<1x16x256xf32>
    %36 = vector.shape_cast %35 : vector<1x16x256xf32> to vector<16x256xf32>
    %37 = vector.shape_cast %34 : vector<16x256xf32> to vector<1x16x256xf32>
    tpu.vector_store %arg4[%c1_34, %c0_35, %c0_36], %37 {strides = array<i32>} : memref<2x16x256xf32, #tpu.memory_space<vmem>>, vector<1x16x256xf32>,
    return
  }
  func.func @transform_0(%arg0: i32) -> (i32, i32, i32) {
    %c0_i32 = arith.constant 0 : i32
    %c0_i32_0 = arith.constant 0 : i32
    %c0_i32_1 = arith.constant 0 : i32
    return %arg0, %c0_i32, %c0_i32_0 : i32, i32, i32
  }
  func.func @transform_1(%arg0: i32) -> (i32, i32) {
    %c0_i32 = arith.constant 0 : i32
    %c0_i32_0 = arith.constant 0 : i32
    %c0_i32_1 = arith.constant 0 : i32
    return %c0_i32, %c0_i32_0 : i32, i32
  }
  func.func @transform_2(%arg0: i32) -> (i32, i32) {
    %c0_i32 = arith.constant 0 : i32
    %c0_i32_0 = arith.constant 0 : i32
    %c0_i32_1 = arith.constant 0 : i32
    return %c0_i32, %c0_i32_0 : i32, i32
  }
  func.func @transform_3(%arg0: i32) -> (i32, i32, i32) {
    %c0_i32 = arith.constant 0 : i32
    %c0_i32_0 = arith.constant 0 : i32
    %c0_i32_1 = arith.constant 0 : i32
    return %arg0, %c0_i32, %c0_i32_0 : i32, i32, i32
  }
}

</mosaic_0001>

<llo_original>
// kernel: tpu_custom_call.1
$region0: #{tpu_custom_call.1}
  #allocation0 [shape = 'u32[]', space=smem, size = 0x4, offset = 0x4, fixed_abs, tag = 'smem constant byte address 0x4 - core index']
  #allocation1 [shape = 'u32[72,128]{1,0:T(1,128)}', space=vmem, size = 0x9000, scoped, tag = 'internal scratch']
  #allocation2 [shape = 'f32[2,16,262]{2,1,0:T(8,128)}', space=vmem, size = 0xc000, scoped, tag = 'scratch operand']
  %s0 = inlined_call_operand.hbm [shape: f32[2,16,256], index: 0, kind: input, shape index: {}]
  %s1 = inlined_call_operand.vmem [shape: f32[16,48], index: 1, kind: input, shape index: {}]
  %s2 = inlined_call_operand.vmem [shape: f32[16,1], index: 2, kind: input, shape index: {}]
  %s3 = inlined_call_operand.hbm [shape: f32[2,16,256], index: 3, kind: output, shape index: {}]
  %s4 = sld [smem:[#allocation0]]
  $region26: #{tpu_custom_call.1} parent=0
    _
  %s6 = ssub.s32 1, %s4
  %s7 = scalar_select 0, %s6, %s4
  $region1: #{tpu_custom_call.1} parent=0
    #allocation3 [shape = 'u8[32768]{0}', space=vmem, size = 0x8000, scoped, tag = 'input window, operand 0, single buffered']
    #allocation4 [shape = 's32[1]{0}', space=sflag, size = 0x4, scoped, tag = 'scoped memory for tpu_custom_call.1']
    #allocation5 [shape = 's32[1]{0}', space=sflag, size = 0x4, scoped, tag = 'scoped memory for tpu_custom_call.1']
    #allocation6 [shape = 'u8[32768]{0}', space=vmem, size = 0x8000, scoped, tag = 'output window, operand 0, single buffered']
    %8 = vsyncpa [#allocation4], 0
    %9 = vsyncpa [#allocation5], 0
    // Predicated region
    $region2: #{tpu_custom_call.1} parent=1 // pred_check
      _
    $region3: #{tpu_custom_call.1} parent=1 // pred_check_branch
      %11 = sbr.rel (0) target = $region5
    $region4: #{tpu_custom_call.1} parent=1 // pred_region
      %13 = vsyncadd [#allocation4], 0
      %s14 = sshll.u32 %s0, 4
      %s15 = int_to_ptr.hbm [resolvable:$true] %s14
      %s16 = sshll.u32 [#allocation3], 4
      %s17 = int_to_ptr.vmem [resolvable:$true] %s16
      %22 = dma.hbm_to_vmem [thread:$0]  %s15, 1024, %s17, [#allocation4], 256, 256, 16
    $region5: #{tpu_custom_call.1} parent=1 // pred_fallthru
      _
    // Predicated region
    $region6: #{tpu_custom_call.1} parent=1 // pred_check
      _
    $region7: #{tpu_custom_call.1} parent=1 // pred_check_branch
      %24 = sbr.rel (0) target = $region9
    $region8: #{tpu_custom_call.1} parent=1 // pred_region
      _
    $region9: #{tpu_custom_call.1} parent=1 // pred_fallthru
      _
    // Predicated region
    $region10: #{tpu_custom_call.1} parent=1 // pred_check
      _
    $region11: #{tpu_custom_call.1} parent=1 // pred_check_branch
      %26 = sbr.rel (0) target = $region13
    $region12: #{tpu_custom_call.1} parent=1 // pred_region
      _
    $region13: #{tpu_custom_call.1} parent=1 // pred_fallthru
      _
    // Predicated region
    $region14: #{tpu_custom_call.1} parent=1 // pred_check
      _
    $region15: #{tpu_custom_call.1} parent=1 // pred_check_branch
      %28 = sbr.rel (0) target = $region17
    $region16: #{tpu_custom_call.1} parent=1 // pred_region
      %30 = dma.done [#allocation4], 1024
    $region17: #{tpu_custom_call.1} parent=1 // pred_fallthru
      _
    %vm31 = vcmask 23552
    %32 = vst.msk [vmem:[#allocation2] sm:$0xff] %vm31, 0.0
    %33 = vst.msk [vmem:[#allocation2 + $0x18] sm:$0xff] %vm31, 0.0
    %34 = vst.msk [vmem:[#allocation2 + $0x30] sm:$0xff] %vm31, 0.0
    %35 = vst.msk [vmem:[#allocation2 + $0x48] sm:$0xff] %vm31, 0.0
    %vm36 = vcmask 48152
    %37 = vst.msk [vmem:[#allocation2 + $0x10] sm:$0xff] %vm36, 0.0
    %38 = vst.msk [vmem:[#allocation2 + $0x28] sm:$0xff] %vm36, 0.0
    %39 = vst.msk [vmem:[#allocation2 + $0x40] sm:$0xff] %vm36, 0.0
    %40 = vst.msk [vmem:[#allocation2 + $0x58] sm:$0xff] %vm36, 0.0
    %v41 = vld [vmem:[#allocation3] sm:$0xff]
    %v42 = vld [vmem:[#allocation3 + $0x8] sm:$0xff]
    %v43 = vld [vmem:[#allocation3 + $0x10] sm:$0xff]
    %v44 = vld [vmem:[#allocation3 + $0x18] sm:$0xff]
    %v45 = vld [vmem:[#allocation3 + $0x20] sm:$0xff]
    %v46 = vld [vmem:[#allocation3 + $0x28] sm:$0xff]
    %v47 = vld [vmem:[#allocation3 + $0x30] sm:$0xff]
    %v48 = vld [vmem:[#allocation3 + $0x38] sm:$0xff]
    %57 = vrot.lane.b32.xlu0 %v41, 3
    %v58 = vpop.permute.xlu0 %57
    %59 = vrot.lane.b32.xlu0 %v42, 3
    %v60 = vpop.permute.xlu0 %59
    %61 = vrot.lane.b32.xlu0 %v43, 3
    %v62 = vpop.permute.xlu0 %61
    %63 = vrot.lane.b32.xlu0 %v44, 3
    %v64 = vpop.permute.xlu0 %63
    %65 = vrot.lane.b32.xlu0 %v45, 3
    %v66 = vpop.permute.xlu0 %65
    %67 = vrot.lane.b32.xlu0 %v46, 3
    %v68 = vpop.permute.xlu0 %67
    %69 = vrot.lane.b32.xlu0 %v47, 3
    %v70 = vpop.permute.xlu0 %69
    %71 = vrot.lane.b32.xlu0 %v48, 3
    %v72 = vpop.permute.xlu0 %71
    %v73 = vsel %vm31, %v58, %v60
    %v74 = vsel %vm31, %v62, %v64
    %v75 = vsel %vm31, %v66, %v68
    %v76 = vsel %vm31, %v70, %v72
    %vm89 = vcmask 1047576
    %90 = vst.msk [vmem:[#allocation2] sm:$0xff] %vm89, %v58
    %91 = vst [vmem:[#allocation2 + $0x8] sm:$0xff] %v73
    %92 = vst.msk [vmem:[#allocation2 + $0x10] sm:$0xff] %vm31, %v60
    %93 = vst.msk [vmem:[#allocation2 + $0x18] sm:$0xff] %vm89, %v62
    %94 = vst [vmem:[#allocation2 + $0x20] sm:$0xff] %v74
    %95 = vst.msk [vmem:[#allocation2 + $0x28] sm:$0xff] %vm31, %v64
    %96 = vst.msk [vmem:[#allocation2 + $0x30] sm:$0xff] %vm89, %v66
    %97 = vst [vmem:[#allocation2 + $0x38] sm:$0xff] %v75
    %98 = vst.msk [vmem:[#allocation2 + $0x40] sm:$0xff] %vm31, %v68
    %99 = vst.msk [vmem:[#allocation2 + $0x48] sm:$0xff] %vm89, %v70
    %100 = vst [vmem:[#allocation2 + $0x50] sm:$0xff] %v76
    %101 = vst.msk [vmem:[#allocation2 + $0x58] sm:$0xff] %vm31, %v72
    %v102 = vld [vmem:[#allocation3] sm:$0xff]
    %v103 = vld [vmem:[#allocation3 + $0x8] sm:$0xff]
    %v104 = vld [vmem:[#allocation3 + $0x10] sm:$0xff]
    %v105 = vld [vmem:[#allocation3 + $0x18] sm:$0xff]
    %v106 = vld [vmem:[#allocation2] sm:$0xff]
    %v107 = vld [vmem:[#allocation2 + $0x8] sm:$0xff]
    %v108 = vld [vmem:[#allocation2 + $0x18] sm:$0xff]
    %v109 = vld [vmem:[#allocation2 + $0x20] sm:$0xff]
    %v110 = vld [vmem:[#allocation2 + $0x10] sm:$0xff]
    %v111 = vld [vmem:[#allocation2 + $0x28] sm:$0xff]
    %118 = vrot.lane.b32.xlu0 %v106, 122
    %v119 = vpop.permute.xlu0 %118
    %120 = vrot.lane.b32.xlu0 %v107, 122
    %v121 = vpop.permute.xlu0 %120
    %122 = vrot.lane.b32.xlu0 %v110, 122
    %v123 = vpop.permute.xlu0 %122
    %124 = vrot.lane.b32.xlu0 %v108, 122
    %v125 = vpop.permute.xlu0 %124
    %126 = vrot.lane.b32.xlu0 %v109, 122
    %v127 = vpop.permute.xlu0 %126
    %128 = vrot.lane.b32.xlu0 %v111, 122
    %v129 = vpop.permute.xlu0 %128
    %vm130 = vcmask 998400
    %v131 = vsel %vm130, %v119, %v121
    %v132 = vsel %vm130, %v121, %v123
    %v133 = vsel %vm130, %v125, %v127
    %v134 = vsel %vm130, %v127, %v129
    %s139 = scalar_lea.vmem [#allocation3], 32
    %v140 = vld [vmem:[%s139] sm:$0xff]
    %v141 = vld [vmem:[%s139 + $0x8] sm:$0xff]
    %v142 = vld [vmem:[%s139 + $0x10] sm:$0xff]
    %v143 = vld [vmem:[%s139 + $0x18] sm:$0xff]
    %s144 = scalar_lea.vmem [#allocation2], 48
    %v145 = vld [vmem:[%s144] sm:$0xff]
    %v146 = vld [vmem:[%s144 + $0x8] sm:$0xff]
    %v147 = vld [vmem:[%s144 + $0x18] sm:$0xff]
    %v148 = vld [vmem:[%s144 + $0x20] sm:$0xff]
    %v149 = vld [vmem:[%s144 + $0x10] sm:$0xff]
    %v150 = vld [vmem:[%s144 + $0x28] sm:$0xff]
    %157 = vrot.lane.b32.xlu0 %v145, 122
    %v158 = vpop.permute.xlu0 %157
    %159 = vrot.lane.b32.xlu0 %v146, 122
    %v160 = vpop.permute.xlu0 %159
    %161 = vrot.lane.b32.xlu0 %v149, 122
    %v162 = vpop.permute.xlu0 %161
    %163 = vrot.lane.b32.xlu0 %v147, 122
    %v164 = vpop.permute.xlu0 %163
    %165 = vrot.lane.b32.xlu0 %v148, 122
    %v166 = vpop.permute.xlu0 %165
    %167 = vrot.lane.b32.xlu0 %v150, 122
    %v168 = vpop.permute.xlu0 %167
    %v169 = vsel %vm130, %v158, %v160
    %v170 = vsel %vm130, %v160, %v162
    %v171 = vsel %vm130, %v164, %v166
    %v172 = vsel %vm130, %v166, %v168
    %v177 = vld [vmem:[%s1] sm:$0xff]
    %v178 = vld [vmem:[%s1 + $0x8] sm:$0xff]
    %v179 = vld [vmem:[%s2] sm:$0xff]
    %v180 = vld [vmem:[%s2 + $0x8] sm:$0xff]
    %182 = vset.pattern.permute.xlu0 0
    %183 = vperm.xlu0 %182, %v179
    %v184 = vpop.permute.xlu0 %183
    %187 = vset.pattern.permute.xlu0 0
    %188 = vperm.xlu0 %187, %v180
    %v189 = vpop.permute.xlu0 %188
    %vm191 = vcmask 392192
    %v193 = vsel %vm191, %v177, 0
    %v196 = vsel %vm191, %v178, 0
    %198 = vmatpush.msra.mxu0 0.0
    %199 = vmatpush.msra.mxu0 0.0
    %200 = vmatpush.msra.mxu0 0.0
    %201 = vmatpush.msra.mxu0 0.0
    %202 = vmatpush.msra.mxu0 0.0
    %203 = vmatpush.msra.mxu0 0.0
    %204 = vmatpush.msra.mxu0 0.0
    %205 = vmatpush.msra.mxu0 0.0
    %206 = vmatpush.msra.mxu0 0.0
    %207 = vmatpush.msra.mxu0 0.0
    %208 = vmatpush.msra.mxu0 %v133
    %209 = vmatpush.msra.mxu0 %v131
    %210 = vmatpush.msra.mxu0 %v104
    %211 = vmatpush.msra.mxu0 %v102
    %212 = vmatpush.msra.mxu0 %v108
    %213 = vmatpush.msra.mxu0 %v106
    %214 = vmatmul.f32.gmra.mxu0 %v193
    %v215 = vpop.f32.mrf.mxu0
    %v216 = vadd.f32 %v184, %v215
    %217 = vmatmul.f32.gmra.mxu0 %v196
    %v218 = vpop.f32.mrf.mxu0
    %v219 = vadd.f32 %v189, %v218
    %220 = vdwg.mxu0
    %221 = vmatpush.msra.mxu0 0.0
    %222 = vmatpush.msra.mxu0 0.0
    %223 = vmatpush.msra.mxu0 0.0
    %224 = vmatpush.msra.mxu0 0.0
    %225 = vmatpush.msra.mxu0 0.0
    %226 = vmatpush.msra.mxu0 0.0
    %227 = vmatpush.msra.mxu0 0.0
    %228 = vmatpush.msra.mxu0 0.0
    %229 = vmatpush.msra.mxu0 0.0
    %230 = vmatpush.msra.mxu0 0.0
    %231 = vmatpush.msra.mxu0 %v134
    %232 = vmatpush.msra.mxu0 %v132
    %233 = vmatpush.msra.mxu0 %v105
    %234 = vmatpush.msra.mxu0 %v103
    %235 = vmatpush.msra.mxu0 %v109
    %236 = vmatpush.msra.mxu0 %v107
    %237 = vmatmul.f32.gmra.mxu0 %v193
    %v238 = vpop.f32.mrf.mxu0
    %v239 = vadd.f32 %v184, %v238
    %240 = vmatmul.f32.gmra.mxu0 %v196
    %v241 = vpop.f32.mrf.mxu0
    %v242 = vadd.f32 %v189, %v241
    %243 = vdwg.mxu0
    %244 = vmatpush.msra.mxu0 0.0
    %245 = vmatpush.msra.mxu0 0.0
    %246 = vmatpush.msra.mxu0 0.0
    %247 = vmatpush.msra.mxu0 0.0
    %248 = vmatpush.msra.mxu0 0.0
    %249 = vmatpush.msra.mxu0 0.0
    %250 = vmatpush.msra.mxu0 0.0
    %251 = vmatpush.msra.mxu0 0.0
    %252 = vmatpush.msra.mxu0 0.0
    %253 = vmatpush.msra.mxu0 0.0
    %254 = vmatpush.msra.mxu0 %v171
    %255 = vmatpush.msra.mxu0 %v169
    %256 = vmatpush.msra.mxu0 %v142
    %257 = vmatpush.msra.mxu0 %v140
    %258 = vmatpush.msra.mxu0 %v147
    %259 = vmatpush.msra.mxu0 %v145
    %260 = vmatmul.f32.gmra.mxu0 %v193
    %v261 = vpop.f32.mrf.mxu0
    %v262 = vadd.f32 %v184, %v261
    %263 = vmatmul.f32.gmra.mxu0 %v196
    %v264 = vpop.f32.mrf.mxu0
    %v265 = vadd.f32 %v189, %v264
    %266 = vdwg.mxu0
    %267 = vmatpush.msra.mxu0 0.0
    %268 = vmatpush.msra.mxu0 0.0
    %269 = vmatpush.msra.mxu0 0.0
    %270 = vmatpush.msra.mxu0 0.0
    %271 = vmatpush.msra.mxu0 0.0
    %272 = vmatpush.msra.mxu0 0.0
    %273 = vmatpush.msra.mxu0 0.0
    %274 = vmatpush.msra.mxu0 0.0
    %275 = vmatpush.msra.mxu0 0.0
    %276 = vmatpush.msra.mxu0 0.0
    %277 = vmatpush.msra.mxu0 %v172
    %278 = vmatpush.msra.mxu0 %v170
    %279 = vmatpush.msra.mxu0 %v143
    %280 = vmatpush.msra.mxu0 %v141
    %281 = vmatpush.msra.mxu0 %v148
    %282 = vmatpush.msra.mxu0 %v146
    %283 = vmatmul.f32.gmra.mxu0 %v193
    %v284 = vpop.f32.mrf.mxu0
    %v285 = vadd.f32 %v184, %v284
    %286 = vmatmul.f32.gmra.mxu0 %v196
    %v287 = vpop.f32.mrf.mxu0
    %v288 = vadd.f32 %v189, %v287
    %289 = vdwg.mxu0
    %v290 = vadd.f32 %v216, %v102
    %v291 = vadd.f32 %v239, %v103
    %v292 = vadd.f32 %v262, %v140
    %v293 = vadd.f32 %v285, %v141
    %v294 = vadd.f32 %v219, %v104
    %v295 = vadd.f32 %v242, %v105
    %v296 = vadd.f32 %v265, %v142
    %v297 = vadd.f32 %v288, %v143
    %v298 = vmul.f32 %v290, 0.2
    %v299 = vmul.f32 %v291, 0.2
    %v300 = vmul.f32 %v292, 0.2
    %v301 = vmul.f32 %v293, 0.2
    %v302 = vmul.f32 %v294, 0.2
    %v303 = vmul.f32 %v295, 0.2
    %v304 = vmul.f32 %v296, 0.2
    %v305 = vmul.f32 %v297, 0.2
    %v306 = vmax.f32 %v290, %v298
    %v307 = vmax.f32 %v291, %v299
    %v308 = vmax.f32 %v292, %v300
    %v309 = vmax.f32 %v293, %v301
    %v310 = vmax.f32 %v294, %v302
    %v311 = vmax.f32 %v295, %v303
    %v312 = vmax.f32 %v296, %v304
    %v313 = vmax.f32 %v297, %v305
    %314 = vst [vmem:[#allocation6] sm:$0xff] %v306
    %315 = vst [vmem:[#allocation6 + $0x8] sm:$0xff] %v307
    %316 = vst [vmem:[#allocation6 + $0x10] sm:$0xff] %v310
    %317 = vst [vmem:[#allocation6 + $0x18] sm:$0xff] %v311
    %s318 = scalar_lea.vmem [#allocation6], 32
    %319 = vst [vmem:[%s318] sm:$0xff] %v308
    %320 = vst [vmem:[%s318 + $0x8] sm:$0xff] %v309
    %321 = vst [vmem:[%s318 + $0x10] sm:$0xff] %v312
    %322 = vst [vmem:[%s318 + $0x18] sm:$0xff] %v313
    // Predicated region
    $region18: #{tpu_custom_call.1} parent=1 // pred_check
      _
    $region19: #{tpu_custom_call.1} parent=1 // pred_check_branch
      %324 = sbr.rel (0) target = $region21
    $region20: #{tpu_custom_call.1} parent=1 // pred_region
      %326 = vsyncadd [#allocation5], 0
      %s327 = sshll.u32 [#allocation6], 4
      %s328 = int_to_ptr.vmem [resolvable:$true] %s327
      %s329 = sshll.u32 %s3, 4
      %s330 = int_to_ptr.hbm [resolvable:$true] %s329
      %335 = dma.vmem_to_hbm [thread:$0]  %s328, 1024, %s330, [#allocation5], 256, 256, 16
    $region21: #{tpu_custom_call.1} parent=1 // pred_fallthru
      _
    // Predicated region
    $region22: #{tpu_custom_call.1} parent=1 // pred_check
      _
    $region23: #{tpu_custom_call.1} parent=1 // pred_check_branch
      %337 = sbr.rel (0) target = $region25
    $region24: #{tpu_custom_call.1} parent=1 // pred_region
      %339 = dma.done [#allocation5], 1024
    $region25: #{tpu_custom_call.1} parent=1 // pred_fallthru
      _
    %340 = vsyncpa [#allocation4], 1
    %341 = vsyncpa [#allocation5], 1

</llo_original>
